<compile_context>
chip_gen: v7x
topology: tpu7x:2x2x1
jax: 0.10.0
libtpu: 0.0.40
codegen_flags: <defaults>
</compile_context>

<pallas_src>
import numpy as np
import jax
import jax.numpy as jnp
from jax.experimental import pallas as pl
from jax.experimental.pallas import tpu as pltpu

POOL_SIZES = (1, 2, 3, 6)
GN_GROUPS = 8
GN_EPS = 1e-5
SPP = sum(p * p for p in POOL_SIZES)   # 50 real pooled positions
SPP_PAD = 64                           # padded to a tile-aligned lane extent


# ---------------------------------------------------------------------------
# Host-side shape-only linear operators (AdaptiveAvgPool2d / bilinear upsample)
# ---------------------------------------------------------------------------
def adaptive_avg_pool_matrix(in_size, out_size):
    A = np.zeros((out_size, in_size), dtype=np.float32)
    for i in range(out_size):
        start = (i * in_size) // out_size
        end = -((-(i + 1) * in_size) // out_size)   # ceil((i+1)*in/out)
        A[i, start:end] = 1.0 / float(end - start)
    return A


def bilinear_upsample_matrix(out_size, in_size):
    # torch.nn.functional.interpolate(mode='bilinear', align_corners=False)
    U = np.zeros((out_size, in_size), dtype=np.float32)
    scale = in_size / out_size
    for o in range(out_size):
        src = (o + 0.5) * scale - 0.5
        src = max(src, 0.0)
        x0 = min(int(np.floor(src)), in_size - 1)
        x1 = min(x0 + 1, in_size - 1)
        lam = src - x0
        U[o, x0] += 1.0 - lam
        U[o, x1] += lam
    return U


# ---------------------------------------------------------------------------
# Pallas kernel: one grid step == `samples_per_step` batch elements.
# ---------------------------------------------------------------------------
def ppm_kernel(x_ref, w0_ref, pt_ref, ut_ref, wcs_ref, wfs_ref, aux_ref, o_ref):
    nb, C, HW = x_ref.shape                       # samples per step, channels, H*W
    NC4 = wcs_ref.shape[0]                        # 4 * C4 (all branch conv channels)
    S = pt_ref.shape[1]                           # padded pooled axis (SPP_PAD)
    gs = (NC4 // len(POOL_SIZES)) // GN_GROUPS    # channels per GroupNorm group

    def bcast(w):                                 # weight -> per-sample batch copy
        return jnp.broadcast_to(w[None], (nb,) + tuple(w.shape))

    def bmm(a, b):                                # (nb,M,K)@(nb,K,N)->(nb,M,N), f32 acc
        return jax.lax.dot_general(
            a, b, dimension_numbers=(((2,), (1,)), ((0,), (0,))),
            preferred_element_type=jnp.float32)

    # input stays f32 in HBM; cast to bf16 on the VPU for the MXU operands
    x = x_ref[...].astype(jnp.bfloat16)                               # (nb, C, HW)

    wmask = aux_ref[0][None]       # (1, NC4, S)  block mask * 1/(p*p)
    bmask = aux_ref[1][None]       # (1, NC4, S)  block mask (valid diag columns)
    gamma = aux_ref[2][None]       # (1, NC4, S)
    beta = aux_ref[3][None]        # (1, NC4, S)

    # 1) all adaptive-avg-pools, all samples: one matmul with M = nb*C
    pooledT = jnp.dot(x.reshape(nb * C, HW), pt_ref[...],
                      preferred_element_type=jnp.float32)             # (nb*C, S)
    pooled = pooledT.reshape(nb, C, S).astype(jnp.bfloat16)           # (nb, C, S)

    # 2) all per-branch 1x1 convs at once (bf16 MXU, f32 accumulation);
    #    only diagonal blocks of the (NC4, S) structure are meaningful.
    yall = bmm(bcast(wcs_ref[...]), pooled)                           # (nb, NC4, S)

    # 3) GroupNorm + ReLU in f32, per (sample, group); no gmix matmul.
    mean = jnp.sum(yall * wmask, axis=2, keepdims=True)               # (nb, NC4, 1)
    if gs > 1:
        ng = NC4 // gs
        mean = jnp.mean(mean.reshape(nb, ng, gs, 1), axis=2, keepdims=True)
        mean = jnp.broadcast_to(mean, (nb, ng, gs, 1)).reshape(nb, NC4, 1)
    d = yall - mean
    var = jnp.sum(d * d * wmask, axis=2, keepdims=True)               # (nb, NC4, 1)
    if gs > 1:
        ng = NC4 // gs
        var = jnp.mean(var.reshape(nb, ng, gs, 1), axis=2, keepdims=True)
        var = jnp.broadcast_to(var, (nb, ng, gs, 1)).reshape(nb, NC4, 1)
    yn = d * jax.lax.rsqrt(var + GN_EPS) * gamma + beta
    yn = (jnp.maximum(yn, 0.0) * bmask).astype(jnp.bfloat16)          # (nb, NC4, S)

    # 4) final 1x1 conv = identity slab + branch slab pushed through the
    #    algebraically fused upsampler.
    acc = bmm(bcast(w0_ref[...]), x)                                  # (nb, C, HW)
    zT = bmm(bcast(wfs_ref[...]), yn)                                 # (nb, C, S)
    up = jnp.dot(zT.astype(jnp.bfloat16).reshape(nb * C, S), ut_ref[...],
                 preferred_element_type=jnp.float32).reshape(nb, C, HW)
    o_ref[...] = (acc + up).astype(o_ref.dtype)                       # lane-dense store


# ---------------------------------------------------------------------------
# Wrapper
# ---------------------------------------------------------------------------
def _auto_samples_per_step(N, C):
    """Fatten the Xc @ PT matmul toward >=128 MXU rows while keeping at least
    two grid steps so v7x's two TensorCores both get a share of the batch."""
    target = max(1, (128 + C - 1) // C)
    nb = 1
    for cand in range(1, N + 1):
        if N % cand == 0 and cand <= target and N // cand >= 2:
            nb = cand
    return nb


def pyramid_pooling_pallas(x_nchw, params, samples_per_step=None, out_dtype=None):
    N, C, H, W = x_nchw.shape
    HW = H * W
    assert C % 32 == 0, "GroupNorm(8, C//4) requires C % 32 == 0"
    NB = samples_per_step if samples_per_step is not None else _auto_samples_per_step(N, C)
    assert N % NB == 0
    if out_dtype is None:
        out_dtype = x_nchw.dtype   # pass jnp.bfloat16 to halve output writeback

    # NCHW -> (N, C, HW) is a free reshape; NO wrapper-side dtype cast.
    x_flat = x_nchw.reshape(N, C, HW)

    w0, pt, ut = params["W0_bf16"], params["PT_bf16"], params["UT_bf16"]
    wcs, wfs, aux = params["WcS_bf16"], params["WfS_bf16"], params["AUX"]

    out = pl.pallas_call(
        ppm_kernel,
        out_shape=jax.ShapeDtypeStruct((N, C, HW), out_dtype),
        grid_spec=pltpu.PrefetchScalarGridSpec(
            num_scalar_prefetch=0,
            grid=(N // NB,),
            in_specs=[
                pl.BlockSpec((NB, C, HW), lambda n: (n, 0, 0)),
                pl.BlockSpec(w0.shape, lambda n: (0, 0)),
                pl.BlockSpec(pt.shape, lambda n: (0, 0)),
                pl.BlockSpec(ut.shape, lambda n: (0, 0)),
                pl.BlockSpec(wcs.shape, lambda n: (0, 0)),
                pl.BlockSpec(wfs.shape, lambda n: (0, 0)),
                pl.BlockSpec(aux.shape, lambda n: (0, 0, 0)),
            ],
            out_specs=pl.BlockSpec((NB, C, HW), lambda n: (n, 0, 0)),
        ),
        compiler_params=pltpu.CompilerParams(
            dimension_semantics=("parallel",)),    # batch steps are independent
    )(x_flat, w0, pt, ut, wcs, wfs, aux)

    return out.reshape(N, C, H, W)


# ---------------------------------------------------------------------------
# Deterministic parameter construction (shapes as in the PyTorch __init__)
# ---------------------------------------------------------------------------
def make_params(key, in_channels, H, W):
    C = in_channels
    C4 = C // 4
    NC4 = len(POOL_SIZES) * C4
    HW = H * W
    nbr = len(POOL_SIZES)
    ks = jax.random.split(key, 1 + 3 * nbr)

    params = {"A": [], "U": [], "Wc": [], "gamma": [], "beta": []}
    P_blocks, U_blocks = [], []
    for i, p in enumerate(POOL_SIZES):
        Ah = adaptive_avg_pool_matrix(H, p)
        Aw = adaptive_avg_pool_matrix(W, p)
        Uh = bilinear_upsample_matrix(H, p)
        Uw = bilinear_upsample_matrix(W, p)
        params["A"].append((jnp.asarray(Ah), jnp.asarray(Aw)))
        params["U"].append((jnp.asarray(Uh), jnp.asarray(Uw)))
        P_blocks.append(np.kron(Ah, Aw))          # (p*p, H*W)
        U_blocks.append(np.kron(Uh, Uw))          # (H*W, p*p)

        Wc = 0.1 * jax.random.normal(ks[1 + 3 * i], (C4, C), jnp.float32)
        gamma = 1.0 + 0.1 * jax.random.normal(ks[2 + 3 * i], (C4,), jnp.float32)
        beta = 0.1 * jax.random.normal(ks[3 + 3 * i], (C4,), jnp.float32)
        params["Wc"].append(Wc)
        params["gamma"].append(gamma)
        params["beta"].append(beta)

    total_c = C + nbr * C4
    Wfinal = 0.05 * jax.random.normal(ks[0], (C, total_c), jnp.float32)
    params["Wfinal"] = Wfinal

    # ---- packed kernel operands (pooled axis zero-padded SPP=50 -> 64) ----
    P_all = np.concatenate(P_blocks, axis=0)                       # (SPP, HW)
    U_all = np.concatenate(U_blocks, axis=1)                       # (HW, SPP)
    P_pad = np.zeros((SPP_PAD, HW), np.float32); P_pad[:SPP] = P_all
    U_pad = np.zeros((HW, SPP_PAD), np.float32); U_pad[:, :SPP] = U_all
    params["PT_bf16"] = jnp.asarray(P_pad.T, jnp.bfloat16)         # (HW, SPP_PAD)
    params["UT_bf16"] = jnp.asarray(U_pad.T, jnp.bfloat16)         # (SPP_PAD, HW)
    params["W0_bf16"] = jnp.asarray(np.asarray(Wfinal)[:, :C], jnp.bfloat16)   # (C, C)
    params["WcS_bf16"] = jnp.concatenate(params["Wc"], axis=0).astype(jnp.bfloat16)  # (NC4, C)
    params["WfS_bf16"] = jnp.asarray(np.asarray(Wfinal)[:, C:], jnp.bfloat16)  # (C, NC4)

    # Host-built GroupNorm / branch-structure constants (one (4, NC4, 64) operand)
    col_branch = np.zeros((SPP_PAD,), np.int32)
    col_valid = np.zeros((SPP_PAD,), np.float32)
    off = 0
    for i, p in enumerate(POOL_SIZES):
        col_branch[off:off + p * p] = i
        col_valid[off:off + p * p] = 1.0
        off += p * p
    assert off == SPP
    row_branch = (np.arange(NC4) // C4).astype(np.int32)
    bmask = (row_branch[:, None] == col_branch[None, :]).astype(np.float32)
    bmask = bmask * col_valid[None, :]                              # (NC4, SPP_PAD)
    inv_pp = np.array([1.0 / (p * p) for p in POOL_SIZES], np.float32)[row_branch]
    wmask = bmask * inv_pp[:, None]
    gamma_all = np.concatenate([np.asarray(g) for g in params["gamma"]])
    beta_all = np.concatenate([np.asarray(b) for b in params["beta"]])
    aux = np.stack([
        wmask, bmask,
        np.broadcast_to(gamma_all[:, None], (NC4, SPP_PAD)).copy(),
        np.broadcast_to(beta_all[:, None], (NC4, SPP_PAD)).copy(),
    ], axis=0).astype(np.float32)
    params["AUX"] = jnp.asarray(aux)                                # (4, NC4, SPP_PAD)
    return params


# ---------------------------------------------------------------------------
# Pure-JAX reference (mirrors the PyTorch forward literally, f32)
# ---------------------------------------------------------------------------
def ppm_reference(x_nchw, params):
    hp = jax.lax.Precision.HIGHEST
    N, C, H, W = x_nchw.shape
    x = jnp.transpose(x_nchw, (0, 2, 3, 1))  # NHWC
    feats = [x]
    for i, p in enumerate(POOL_SIZES):
        Ah, Aw = params["A"][i]
        t = jnp.einsum("ah,nhwc->nawc", Ah, x, precision=hp)
        pooled = jnp.einsum("bw,nawc->nabc", Aw, t, precision=hp)
        y = jnp.einsum("nabc,dc->nabd", pooled, params["Wc"][i], precision=hp)
        C4 = y.shape[-1]
        gs = C4 // GN_GROUPS
        yg = y.reshape(N, p, p, GN_GROUPS, gs)
        mean = yg.mean(axis=(1, 2, 4), keepdims=True)
        var = ((yg - mean) ** 2).mean(axis=(1, 2, 4), keepdims=True)
        yg = (yg - mean) / jnp.sqrt(var + GN_EPS)
        y = yg.reshape(N, p, p, C4) * params["gamma"][i] + params["beta"][i]
        y = jnp.maximum(y, 0.0)
        Uh, Uw = params["U"][i]
        t = jnp.einsum("Ha,nabc->nHbc", Uh, y, precision=hp)
        up = jnp.einsum("Wb,nHbc->nHWc", Uw, t, precision=hp)
        feats.append(up)
    feat = jnp.concatenate(feats, axis=-1)
    out = jnp.einsum("nhwc,oc->nhwo", feat, params["Wfinal"], precision=hp)
    return jnp.transpose(out, (0, 3, 1, 2))


if __name__ == "__main__":
    # in_channels must satisfy GroupNorm(8, in_channels // 4) -> C % 32 == 0
    N, C, H, W = 2, 32, 16, 16
    key = jax.random.PRNGKey(0)
    kx, kp = jax.random.split(key)
    x = jax.random.normal(kx, (N, C, H, W), jnp.float32)
    params = make_params(kp, C, H, W)

    # Small batch: auto-picks 1 sample/step -> grid of 2 "parallel" steps.
    out = jax.block_until_ready(pyramid_pooling_pallas(x, params))
    assert out.shape == (N, C, H, W)
    ref = ppm_reference(x, params)
    err = float(jnp.max(jnp.abs(out - ref)))
    # bf16 MXU operands (x, pooling/upsample operators, W0, Wc, Wf); GroupNorm
    # statistics stay in f32, so tolerance is loose but bounded.
    assert np.isfinite(err) and err < 6e-2, f"max abs error {err}"

    # Larger batch exercises the multi-sample-per-step (fat-M) path (NB=4).
    N2 = 8
    kx2, _ = jax.random.split(kx)
    x2 = jax.random.normal(kx2, (N2, C, H, W), jnp.float32)
    out2 = jax.block_until_ready(pyramid_pooling_pallas(x2, params))
    assert out2.shape == (N2, C, H, W)
    ref2 = ppm_reference(x2, params)
    err2 = float(jnp.max(jnp.abs(out2 - ref2)))
    assert np.isfinite(err2) and err2 < 6e-2, f"max abs error (batched) {err2}"

    print("KERNEL_OK")
</pallas_src>

<mosaic_0001>
module attributes {stable_mosaic.version = 11 : i64} {
  func.func @ppm_kernel(%arg0: i32, %arg1: memref<1x32x256xf32, #tpu.memory_space<vmem>>, %arg2: memref<32x32xbf16, #tpu.memory_space<vmem>>, %arg3: memref<256x64xbf16, #tpu.memory_space<vmem>>, %arg4: memref<64x256xbf16, #tpu.memory_space<vmem>>, %arg5: memref<32x32xbf16, #tpu.memory_space<vmem>>, %arg6: memref<32x32xbf16, #tpu.memory_space<vmem>>, %arg7: memref<4x32x64xf32, #tpu.memory_space<vmem>>, %arg8: memref<1x32x256xf32, #tpu.memory_space<vmem>>) attributes {dimension_semantics = [#tpu.dimension_semantics<parallel>], iteration_bounds = array<i64: 2>, scalar_prefetch = 0 : i64, scratch_operands = 0 : i64, tpu.core_type = #tpu.core_type<tc>, window_params = [{transform_indices = @transform_0, window_bounds = array<i64: 1, 32, 256>}, {pipeline_mode = #tpu.pipeline_mode<synchronous>, transform_indices = @transform_1, window_bounds = array<i64: 32, 32>}, {pipeline_mode = #tpu.pipeline_mode<synchronous>, transform_indices = @transform_2, window_bounds = array<i64: 256, 64>}, {pipeline_mode = #tpu.pipeline_mode<synchronous>, transform_indices = @transform_3, window_bounds = array<i64: 64, 256>}, {pipeline_mode = #tpu.pipeline_mode<synchronous>, transform_indices = @transform_4, window_bounds = array<i64: 32, 32>}, {pipeline_mode = #tpu.pipeline_mode<synchronous>, transform_indices = @transform_5, window_bounds = array<i64: 32, 32>}, {pipeline_mode = #tpu.pipeline_mode<synchronous>, transform_indices = @transform_6, window_bounds = array<i64: 4, 32, 64>}, {transform_indices = @transform_7, window_bounds = array<i64: 1, 32, 256>}]} {
    %c0 = arith.constant 0 : index
    %c0_0 = arith.constant 0 : index
    %c0_1 = arith.constant 0 : index
    %0 = vector.load %arg1[%c0, %c0_0, %c0_1] : memref<1x32x256xf32, #tpu.memory_space<vmem>>, vector<1x32x256xf32>
    %1 = arith.truncf %0 : vector<1x32x256xf32> to vector<1x32x256xbf16>
    %c0_2 = arith.constant 0 : index
    %c0_3 = arith.constant 0 : index
    %c0_4 = arith.constant 0 : index
    %2 = vector.load %arg7[%c0_2, %c0_3, %c0_4] : memref<4x32x64xf32, #tpu.memory_space<vmem>>, vector<1x32x64xf32>
    %3 = vector.shape_cast %2 : vector<1x32x64xf32> to vector<32x64xf32>
    %4 = vector.shape_cast %3 : vector<32x64xf32> to vector<1x32x64xf32>
    %c1 = arith.constant 1 : index
    %c0_5 = arith.constant 0 : index
    %c0_6 = arith.constant 0 : index
    %5 = vector.load %arg7[%c1, %c0_5, %c0_6] : memref<4x32x64xf32, #tpu.memory_space<vmem>>, vector<1x32x64xf32>
    %6 = vector.shape_cast %5 : vector<1x32x64xf32> to vector<32x64xf32>
    %7 = vector.shape_cast %6 : vector<32x64xf32> to vector<1x32x64xf32>
    %c2 = arith.constant 2 : index
    %c0_7 = arith.constant 0 : index
    %c0_8 = arith.constant 0 : index
    %8 = vector.load %arg7[%c2, %c0_7, %c0_8] : memref<4x32x64xf32, #tpu.memory_space<vmem>>, vector<1x32x64xf32>
    %9 = vector.shape_cast %8 : vector<1x32x64xf32> to vector<32x64xf32>
    %10 = vector.shape_cast %9 : vector<32x64xf32> to vector<1x32x64xf32>
    %c3 = arith.constant 3 : index
    %c0_9 = arith.constant 0 : index
    %c0_10 = arith.constant 0 : index
    %11 = vector.load %arg7[%c3, %c0_9, %c0_10] : memref<4x32x64xf32, #tpu.memory_space<vmem>>, vector<1x32x64xf32>
    %12 = vector.shape_cast %11 : vector<1x32x64xf32> to vector<32x64xf32>
    %13 = vector.shape_cast %12 : vector<32x64xf32> to vector<1x32x64xf32>
    %14 = vector.shape_cast %1 : vector<1x32x256xbf16> to vector<32x256xbf16>
    %c0_11 = arith.constant 0 : index
    %c0_12 = arith.constant 0 : index
    %15 = vector.load %arg3[%c0_11, %c0_12] : memref<256x64xbf16, #tpu.memory_space<vmem>>, vector<256x64xbf16>
    %cst = arith.constant dense<0.000000e+00> : vector<32x64xf32>
    %16 = tpu.matmul %14, %15, %cst {dimension_numbers = #tpu.dot_dimension_numbers<[1], [0], [0], [1], [0, 0, 1, 1], [], []>} : vector<32x256xbf16>, vector<256x64xbf16>, vector<32x64xf32> -> vector<32x64xf32>
    %17 = vector.shape_cast %16 : vector<32x64xf32> to vector<1x32x64xf32>
    %18 = arith.truncf %17 : vector<1x32x64xf32> to vector<1x32x64xbf16>
    %c0_13 = arith.constant 0 : index
    %c0_14 = arith.constant 0 : index
    %19 = vector.load %arg5[%c0_13, %c0_14] : memref<32x32xbf16, #tpu.memory_space<vmem>>, vector<32x32xbf16>
    %20 = vector.shape_cast %19 : vector<32x32xbf16> to vector<1x32x32xbf16>
    %cst_15 = arith.constant dense<0.000000e+00> : vector<1x32x64xf32>
    %21 = tpu.matmul %20, %18, %cst_15 {dimension_numbers = #tpu.dot_dimension_numbers<[2], [1], [1], [2], [0, 0, 0, 1, 1, 2], [0], [0]>} : vector<1x32x32xbf16>, vector<1x32x64xbf16>, vector<1x32x64xf32> -> vector<1x32x64xf32>
    %22 = arith.mulf %21, %4 : vector<1x32x64xf32>
    %cst_16 = arith.constant dense<0.000000e+00> : vector<1x32xf32>
    %23 = vector.multi_reduction <add>, %22, %cst_16 [2] : vector<1x32x64xf32> to vector<1x32xf32>
    %24 = vector.shape_cast %23 : vector<1x32xf32> to vector<1x32x1xf32>
    %25 = vector.broadcast %24 : vector<1x32x1xf32> to vector<1x32x64xf32>
    %26 = arith.subf %21, %25 : vector<1x32x64xf32>
    %27 = arith.mulf %26, %26 : vector<1x32x64xf32>
    %28 = arith.mulf %27, %4 : vector<1x32x64xf32>
    %cst_17 = arith.constant dense<0.000000e+00> : vector<1x32xf32>
    %29 = vector.multi_reduction <add>, %28, %cst_17 [2] : vector<1x32x64xf32> to vector<1x32xf32>
    %30 = vector.shape_cast %29 : vector<1x32xf32> to vector<1x32x1xf32>
    %cst_18 = arith.constant 9.99999974E-6 : f32
    %31 = vector.broadcast %cst_18 : f32 to vector<1x32x1xf32>
    %32 = arith.addf %30, %31 : vector<1x32x1xf32>
    %33 = math.rsqrt %32 : vector<1x32x1xf32>
    %34 = vector.broadcast %33 : vector<1x32x1xf32> to vector<1x32x64xf32>
    %35 = arith.mulf %26, %34 : vector<1x32x64xf32>
    %36 = arith.mulf %35, %10 : vector<1x32x64xf32>
    %37 = arith.addf %36, %13 : vector<1x32x64xf32>
    %cst_19 = arith.constant 0.000000e+00 : f32
    %38 = vector.broadcast %cst_19 : f32 to vector<1x32x64xf32>
    %39 = arith.maximumf %37, %38 : vector<1x32x64xf32>
    %40 = arith.mulf %39, %7 : vector<1x32x64xf32>
    %41 = arith.truncf %40 : vector<1x32x64xf32> to vector<1x32x64xbf16>
    %c0_20 = arith.constant 0 : index
    %c0_21 = arith.constant 0 : index
    %42 = vector.load %arg2[%c0_20, %c0_21] : memref<32x32xbf16, #tpu.memory_space<vmem>>, vector<32x32xbf16>
    %43 = vector.shape_cast %42 : vector<32x32xbf16> to vector<1x32x32xbf16>
    %cst_22 = arith.constant dense<0.000000e+00> : vector<1x32x256xf32>
    %44 = tpu.matmul %43, %1, %cst_22 {dimension_numbers = #tpu.dot_dimension_numbers<[2], [1], [1], [2], [0, 0, 0, 1, 1, 2], [0], [0]>} : vector<1x32x32xbf16>, vector<1x32x256xbf16>, vector<1x32x256xf32> -> vector<1x32x256xf32>
    %c0_23 = arith.constant 0 : index
    %c0_24 = arith.constant 0 : index
    %45 = vector.load %arg6[%c0_23, %c0_24] : memref<32x32xbf16, #tpu.memory_space<vmem>>, vector<32x32xbf16>
    %46 = vector.shape_cast %45 : vector<32x32xbf16> to vector<1x32x32xbf16>
    %cst_25 = arith.constant dense<0.000000e+00> : vector<1x32x64xf32>
    %47 = tpu.matmul %46, %41, %cst_25 {dimension_numbers = #tpu.dot_dimension_numbers<[2], [1], [1], [2], [0, 0, 0, 1, 1, 2], [0], [0]>} : vector<1x32x32xbf16>, vector<1x32x64xbf16>, vector<1x32x64xf32> -> vector<1x32x64xf32>
    %48 = arith.truncf %47 : vector<1x32x64xf32> to vector<1x32x64xbf16>
    %49 = vector.shape_cast %48 : vector<1x32x64xbf16> to vector<32x64xbf16>
    %c0_26 = arith.constant 0 : index
    %c0_27 = arith.constant 0 : index
    %50 = vector.load %arg4[%c0_26, %c0_27] : memref<64x256xbf16, #tpu.memory_space<vmem>>, vector<64x256xbf16>
    %cst_28 = arith.constant dense<0.000000e+00> : vector<32x256xf32>
    %51 = tpu.matmul %49, %50, %cst_28 {dimension_numbers = #tpu.dot_dimension_numbers<[1], [0], [0], [1], [0, 0, 1, 1], [], []>} : vector<32x64xbf16>, vector<64x256xbf16>, vector<32x256xf32> -> vector<32x256xf32>
    %52 = vector.shape_cast %51 : vector<32x256xf32> to vector<1x32x256xf32>
    %53 = arith.addf %44, %52 : vector<1x32x256xf32>
    %c0_29 = arith.constant 0 : index
    %c0_30 = arith.constant 0 : index
    %c0_31 = arith.constant 0 : index
    %54 = vector.load %arg8[%c0_29, %c0_30, %c0_31] : memref<1x32x256xf32, #tpu.memory_space<vmem>>, vector<1x32x256xf32>
    tpu.vector_store %arg8[%c0_29, %c0_30, %c0_31], %53 {strides = array<i32>} : memref<1x32x256xf32, #tpu.memory_space<vmem>>, vector<1x32x256xf32>,
    return
  }
  func.func @transform_0(%arg0: i32) -> (i32, i32, i32) {
    %c0_i32 = arith.constant 0 : i32
    %c0_i32_0 = arith.constant 0 : i32
    %c0_i32_1 = arith.constant 0 : i32
    return %arg0, %c0_i32, %c0_i32_0 : i32, i32, i32
  }
  func.func @transform_1(%arg0: i32) -> (i32, i32) {
    %c0_i32 = arith.constant 0 : i32
    %c0_i32_0 = arith.constant 0 : i32
    %c0_i32_1 = arith.constant 0 : i32
    return %c0_i32, %c0_i32_0 : i32, i32
  }
  func.func @transform_2(%arg0: i32) -> (i32, i32) {
    %c0_i32 = arith.constant 0 : i32
    %c0_i32_0 = arith.constant 0 : i32
    %c0_i32_1 = arith.constant 0 : i32
    return %c0_i32, %c0_i32_0 : i32, i32
  }
  func.func @transform_3(%arg0: i32) -> (i32, i32) {
    %c0_i32 = arith.constant 0 : i32
    %c0_i32_0 = arith.constant 0 : i32
    %c0_i32_1 = arith.constant 0 : i32
    return %c0_i32, %c0_i32_0 : i32, i32
  }
  func.func @transform_4(%arg0: i32) -> (i32, i32) {
    %c0_i32 = arith.constant 0 : i32
    %c0_i32_0 = arith.constant 0 : i32
    %c0_i32_1 = arith.constant 0 : i32
    return %c0_i32, %c0_i32_0 : i32, i32
  }
  func.func @transform_5(%arg0: i32) -> (i32, i32) {
    %c0_i32 = arith.constant 0 : i32
    %c0_i32_0 = arith.constant 0 : i32
    %c0_i32_1 = arith.constant 0 : i32
    return %c0_i32, %c0_i32_0 : i32, i32
  }
  func.func @transform_6(%arg0: i32) -> (i32, i32, i32) {
    %c0_i32 = arith.constant 0 : i32
    %c0_i32_0 = arith.constant 0 : i32
    %c0_i32_1 = arith.constant 0 : i32
    %c0_i32_2 = arith.constant 0 : i32
    return %c0_i32, %c0_i32_0, %c0_i32_1 : i32, i32, i32
  }
  func.func @transform_7(%arg0: i32) -> (i32, i32, i32) {
    %c0_i32 = arith.constant 0 : i32
    %c0_i32_0 = arith.constant 0 : i32
    %c0_i32_1 = arith.constant 0 : i32
    return %arg0, %c0_i32, %c0_i32_0 : i32, i32, i32
  }
}

</mosaic_0001>

<llo_original>
// kernel: tpu_custom_call.1
$region0: #{tpu_custom_call.1}
  #allocation0 [shape = 'u32[]', space=smem, size = 0x4, offset = 0x4, fixed_abs, tag = 'smem constant byte address 0x4 - core index']
  #allocation1 [shape = 'u32[144,128]{1,0:T(1,128)}', space=vmem, size = 0x12000, scoped, tag = 'internal scratch']
  %s0 = inlined_call_operand.vmem [shape: f32[2,32,256], index: 0, kind: input, shape index: {}]
  %s1 = inlined_call_operand.hbm [shape: bf16[32,32], index: 1, kind: input, shape index: {}]
  %s2 = inlined_call_operand.vmem [shape: bf16[256,64], index: 2, kind: input, shape index: {}]
  %s3 = inlined_call_operand.vmem [shape: bf16[64,256], index: 3, kind: input, shape index: {}]
  %s4 = inlined_call_operand.hbm [shape: bf16[32,32], index: 4, kind: input, shape index: {}]
  %s5 = inlined_call_operand.vmem [shape: bf16[32,32], index: 5, kind: input, shape index: {}]
  %s6 = inlined_call_operand.hbm [shape: f32[4,32,64], index: 6, kind: input, shape index: {}]
  %s7 = inlined_call_operand.hbm [shape: f32[2,32,256], index: 7, kind: output, shape index: {}]
  %s8 = sld [smem:[#allocation0]]
  $region73: #{tpu_custom_call.1} parent=0
    _
  %s10 = ssub.s32 1, %s8
  %s11 = scalar_select 0, %s10, %s8
  $region1: #{tpu_custom_call.1} parent=0
    #allocation2 [shape = 'u8[8192]{0}', space=vmem, size = 0x2000, scoped, tag = 'input window, operand 1, single buffered']
    #allocation3 [shape = 's32[2]{0}', space=sflag, size = 0x8, scoped, tag = 'scoped memory for tpu_custom_call.1']
    #allocation4 [shape = 's32[2]{0}', space=sflag, size = 0x8, scoped, tag = 'scoped memory for tpu_custom_call.1']
    #allocation5 [shape = 'u8[8192]{0}', space=vmem, size = 0x2000, scoped, tag = 'input window, operand 4, single buffered']
    #allocation6 [shape = 's32[1]{0}', space=sflag, size = 0x4, scoped, tag = 'scoped memory for tpu_custom_call.1']
    #allocation7 [shape = 'u8[65536]{0}', space=vmem, size = 0x10000, scoped, tag = 'input window, operand 6, single buffered']
    #allocation8 [shape = 'u8[65536]{0}', space=vmem, size = 0x10000, scoped, tag = 'output window, operand 0']
    %12 = vsyncpa [#allocation3], 0
    %13 = vsyncpa [#allocation6], 0
    %14 = vsyncpa [#allocation4], 0
    %s15 = scalar_lea.sflag [#allocation4], 1
    %16 = vsyncpa %s15, 0
    loop: start=0, step=1, limit=4
    $region2: #{tpu_custom_call.1} parent=1 // loop_pre_header
      _
    $region3: #{tpu_custom_call.1} parent=1 // loop_header
      %s18 = sphi 0, %s22
      %p19 = scmp.ge.s32.totalorder %s18, 4
      %s28 = sphi 0, %s30
      %s31 = sphi 0, %s28
      %s32 = sphi 0, %s31
      %s48 = sphi 0, %s32
      %s52 = sphi 0, %s52
      %s54 = sphi 0, %s52
      %s55 = sphi 0, %s54
      %s69 = sphi 0, %s55
      %s73 = sphi 0, %s73
      %s75 = sphi 0, %s73
      %s76 = sphi 0, %s75
      %s90 = sphi 0, %s76
      %s94 = sphi 0, %s94
      %s96 = sphi 0, %s94
      %s97 = sphi 0, %s96
      %s111 = sphi 0, %s97
      %s115 = sphi 0, %s115
      %s117 = sphi 0, %s115
      %s118 = sphi 0, %s117
      %s132 = sphi 0, %s118
      %s136 = sphi 0, %s136
      %s138 = sphi 0, %s136
      %s139 = sphi 0, %s138
      %s153 = sphi 0, %s139
      %s157 = sphi 0, %s157
      %s159 = sphi 0, %s157
      %s160 = sphi 0, %s159
      %s174 = sphi 0, %s160
      %s180 = sphi 0, %s182
      %s183 = sphi 0, %s180
      %s184 = sphi 0, %s183
      %s200 = sphi 0, %s184
    $region4: #{tpu_custom_call.1} parent=1 // loop_header_branch
      %21 = sbr.rel (%p19) target = $region8
    $region5: #{tpu_custom_call.1} parent=1 // loop_body
      %s23 = ssub.s32 %s18, 1
      %s24 = ssub.s32 %s18, 2
      %s25 = sadd.s32 %s18, 1
      %s26 = ssub.s32 %s18, %s25
      %p27 = scmp.eq.s32.totalorder %s26, 0
      %s29 = sadd.s32 %s28, 1
      %s30 = scalar_select %p27, %s28, %s29
      %p33 = pneg %p27
      %p34 = scmp.eq.s32.totalorder %s18, 1
      %p35 = por %p33, %p34
      %p36 = scmp.ne.s32.totalorder %s28, %s31
      %p37 = scmp.eq.s32.totalorder %s18, 0
      %p38 = por %p36, %p37
      %p39 = scmp.ne.s32.totalorder %s28, %s31
      %p40 = scmp.eq.s32.totalorder %s23, 1
      %p41 = por %p39, %p40
      %p42 = scmp.ne.s32.totalorder %s31, %s32
      %p43 = scmp.eq.s32.totalorder %s23, 0
      %p44 = por %p42, %p43
      %p45 = scmp.ne.s32.totalorder %s31, %s32
      %p46 = scmp.eq.s32.totalorder %s24, 1
      %p47 = por %p45, %p46
      %p49 = scmp.ne.s32.totalorder %s32, %s48
      %p50 = scmp.eq.s32.totalorder %s24, 0
      %p51 = por %p49, %p50
      %s53 = sadd.s32 %s52, 1
      %p56 = scmp.eq.s32.totalorder %s18, 1
      %p57 = scmp.ne.s32.totalorder %s52, %s54
      %p58 = scmp.eq.s32.totalorder %s18, 0
      %p59 = por %p57, %p58
      %p60 = scmp.ne.s32.totalorder %s52, %s54
      %p61 = scmp.eq.s32.totalorder %s23, 1
      %p62 = por %p60, %p61
      %p63 = scmp.ne.s32.totalorder %s54, %s55
      %p64 = scmp.eq.s32.totalorder %s23, 0
      %p65 = por %p63, %p64
      %p66 = scmp.ne.s32.totalorder %s54, %s55
      %p67 = scmp.eq.s32.totalorder %s24, 1
      %p68 = por %p66, %p67
      %p70 = scmp.ne.s32.totalorder %s55, %s69
      %p71 = scmp.eq.s32.totalorder %s24, 0
      %p72 = por %p70, %p71
      %s74 = sadd.s32 %s73, 1
      %p77 = scmp.eq.s32.totalorder %s18, 1
      %p78 = scmp.ne.s32.totalorder %s73, %s75
      %p79 = scmp.eq.s32.totalorder %s18, 0
      %p80 = por %p78, %p79
      %p81 = scmp.ne.s32.totalorder %s73, %s75
      %p82 = scmp.eq.s32.totalorder %s23, 1
      %p83 = por %p81, %p82
      %p84 = scmp.ne.s32.totalorder %s75, %s76
      %p85 = scmp.eq.s32.totalorder %s23, 0
      %p86 = por %p84, %p85
      %p87 = scmp.ne.s32.totalorder %s75, %s76
      %p88 = scmp.eq.s32.totalorder %s24, 1
      %p89 = por %p87, %p88
      %p91 = scmp.ne.s32.totalorder %s76, %s90
      %p92 = scmp.eq.s32.totalorder %s24, 0
      %p93 = por %p91, %p92
      %s95 = sadd.s32 %s94, 1
      %p98 = scmp.eq.s32.totalorder %s18, 1
      %p99 = scmp.ne.s32.totalorder %s94, %s96
      %p100 = scmp.eq.s32.totalorder %s18, 0
      %p101 = por %p99, %p100
      %p102 = scmp.ne.s32.totalorder %s94, %s96
      %p103 = scmp.eq.s32.totalorder %s23, 1
      %p104 = por %p102, %p103
      %p105 = scmp.ne.s32.totalorder %s96, %s97
      %p106 = scmp.eq.s32.totalorder %s23, 0
      %p107 = por %p105, %p106
      %p108 = scmp.ne.s32.totalorder %s96, %s97
      %p109 = scmp.eq.s32.totalorder %s24, 1
      %p110 = por %p108, %p109
      %p112 = scmp.ne.s32.totalorder %s97, %s111
      %p113 = scmp.eq.s32.totalorder %s24, 0
      %p114 = por %p112, %p113
      %s116 = sadd.s32 %s115, 1
      %p119 = scmp.eq.s32.totalorder %s18, 1
      %p120 = scmp.ne.s32.totalorder %s115, %s117
      %p121 = scmp.eq.s32.totalorder %s18, 0
      %p122 = por %p120, %p121
      %p123 = scmp.ne.s32.totalorder %s115, %s117
      %p124 = scmp.eq.s32.totalorder %s23, 1
      %p125 = por %p123, %p124
      %p126 = scmp.ne.s32.totalorder %s117, %s118
      %p127 = scmp.eq.s32.totalorder %s23, 0
      %p128 = por %p126, %p127
      %p129 = scmp.ne.s32.totalorder %s117, %s118
      %p130 = scmp.eq.s32.totalorder %s24, 1
      %p131 = por %p129, %p130
      %p133 = scmp.ne.s32.totalorder %s118, %s132
      %p134 = scmp.eq.s32.totalorder %s24, 0
      %p135 = por %p133, %p134
      %s137 = sadd.s32 %s136, 1
      %p140 = scmp.eq.s32.totalorder %s18, 1
      %p141 = scmp.ne.s32.totalorder %s136, %s138
      %p142 = scmp.eq.s32.totalorder %s18, 0
      %p143 = por %p141, %p142
      %p144 = scmp.ne.s32.totalorder %s136, %s138
      %p145 = scmp.eq.s32.totalorder %s23, 1
      %p146 = por %p144, %p145
      %p147 = scmp.ne.s32.totalorder %s138, %s139
      %p148 = scmp.eq.s32.totalorder %s23, 0
      %p149 = por %p147, %p148
      %p150 = scmp.ne.s32.totalorder %s138, %s139
      %p151 = scmp.eq.s32.totalorder %s24, 1
      %p152 = por %p150, %p151
      %p154 = scmp.ne.s32.totalorder %s139, %s153
      %p155 = scmp.eq.s32.totalorder %s24, 0
      %p156 = por %p154, %p155
      %s158 = sadd.s32 %s157, 1
      %p161 = scmp.eq.s32.totalorder %s18, 1
      %p162 = scmp.ne.s32.totalorder %s157, %s159
      %p163 = scmp.eq.s32.totalorder %s18, 0
      %p164 = por %p162, %p163
      %p165 = scmp.ne.s32.totalorder %s157, %s159
      %p166 = scmp.eq.s32.totalorder %s23, 1
      %p167 = por %p165, %p166
      %p168 = scmp.ne.s32.totalorder %s159, %s160
      %p169 = scmp.eq.s32.totalorder %s23, 0
      %p170 = por %p168, %p169
      %p171 = scmp.ne.s32.totalorder %s159, %s160
      %p172 = scmp.eq.s32.totalorder %s24, 1
      %p173 = por %p171, %p172
      %p175 = scmp.ne.s32.totalorder %s160, %s174
      %p176 = scmp.eq.s32.totalorder %s24, 0
      %p177 = por %p175, %p176
      %s178 = ssub.s32 %s18, %s25
      %p179 = scmp.eq.s32.totalorder %s178, 0
      %s181 = sadd.s32 %s180, 1
      %s182 = scalar_select %p179, %s180, %s181
      %p185 = pneg %p179
      %p186 = scmp.eq.s32.totalorder %s18, 1
      %p187 = por %p185, %p186
      %p188 = scmp.ne.s32.totalorder %s180, %s183
      %p189 = scmp.eq.s32.totalorder %s18, 0
      %p190 = por %p188, %p189
      %p191 = scmp.ne.s32.totalorder %s180, %s183
      %p192 = scmp.eq.s32.totalorder %s23, 1
      %p193 = por %p191, %p192
      %p194 = scmp.ne.s32.totalorder %s183, %s184
      %p195 = scmp.eq.s32.totalorder %s23, 0
      %p196 = por %p194, %p195
      %p197 = scmp.ne.s32.totalorder %s183, %s184
      %p198 = scmp.eq.s32.totalorder %s24, 1
      %p199 = por %p197, %p198
      %p201 = scmp.ne.s32.totalorder %s184, %s200
      %p202 = scmp.eq.s32.totalorder %s24, 0
      %p203 = por %p201, %p202
      %p204 = scmp.le.s32.totalorder 1, %s18
      %p205 = scmp.lt.s32.totalorder %s18, 3
      %p206 = pnand %p204, %p205
      %p207 = pneg %p206
      // Predicated region
      $region9: #{tpu_custom_call.1} parent=5 // pred_check
        _
      $region10: #{tpu_custom_call.1} parent=5 // pred_check_branch
        %209 = sbr.rel (%p206) target = $region12
      $region11: #{tpu_custom_call.1} parent=5 // pred_region
        %s210 = ssub.s32 %s18, 1
        // Predicated region
        $region13: #{tpu_custom_call.1} parent=11 // pred_check
          %p211 = pneg %p65
        $region14: #{tpu_custom_call.1} parent=11 // pred_check_branch
          %213 = sbr.rel (%p211) target = $region16
        $region15: #{tpu_custom_call.1} parent=11 // pred_region
          %s215 = ssub.s32 256, 256
          %216 = vsyncadd [#allocation3], %s215
          %s217 = sshll.u32 [#allocation2], 4
          %s218 = int_to_ptr.vmem [resolvable:$true] %s217
          %223 = dma.hbm_to_vmem [thread:$0]  %s1, 256, %s218, [#allocation3], 64, 64, 4
        $region16: #{tpu_custom_call.1} parent=11 // pred_fallthru
          _
        // Predicated region
        $region17: #{tpu_custom_call.1} parent=11 // pred_check
          %p224 = pneg %p86
        $region18: #{tpu_custom_call.1} parent=11 // pred_check_branch
          %226 = sbr.rel (%p224) target = $region20
        $region19: #{tpu_custom_call.1} parent=11 // pred_region
          _
        $region20: #{tpu_custom_call.1} parent=11 // pred_fallthru
          _
        // Predicated region
        $region21: #{tpu_custom_call.1} parent=11 // pred_check
          %p227 = pneg %p107
        $region22: #{tpu_custom_call.1} parent=11 // pred_check_branch
          %229 = sbr.rel (%p227) target = $region24
        $region23: #{tpu_custom_call.1} parent=11 // pred_region
          _
        $region24: #{tpu_custom_call.1} parent=11 // pred_fallthru
          _
        // Predicated region
        $region25: #{tpu_custom_call.1} parent=11 // pred_check
          %p230 = pneg %p128
        $region26: #{tpu_custom_call.1} parent=11 // pred_check_branch
          %232 = sbr.rel (%p230) target = $region28
        $region27: #{tpu_custom_call.1} parent=11 // pred_region
          %s234 = ssub.s32 256, 256
          %235 = vsyncadd [#allocation6], %s234
          %s236 = sshll.u32 [#allocation5], 4
          %s237 = int_to_ptr.vmem [resolvable:$true] %s236
          %242 = dma.hbm_to_vmem [thread:$0]  %s4, 256, %s237, [#allocation6], 64, 64, 4
        $region28: #{tpu_custom_call.1} parent=11 // pred_fallthru
          _
        // Predicated region
        $region29: #{tpu_custom_call.1} parent=11 // pred_check
          %p243 = pneg %p149
        $region30: #{tpu_custom_call.1} parent=11 // pred_check_branch
          %245 = sbr.rel (%p243) target = $region32
        $region31: #{tpu_custom_call.1} parent=11 // pred_region
          _
        $region32: #{tpu_custom_call.1} parent=11 // pred_fallthru
          _
        // Predicated region
        $region33: #{tpu_custom_call.1} parent=11 // pred_check
          %p246 = pneg %p170
        $region34: #{tpu_custom_call.1} parent=11 // pred_check_branch
          %248 = sbr.rel (%p246) target = $region36
        $region35: #{tpu_custom_call.1} parent=11 // pred_region
          %s250 = ssub.s32 2048, 2048
          %251 = vsyncadd [#allocation6], %s250
          %s252 = sshll.u32 [#allocation7], 4
          %s253 = int_to_ptr.vmem [resolvable:$true] %s252
          %258 = dma.hbm_to_vmem [thread:$0]  %s6, 2048, %s253, [#allocation6], 128, 128, 8
        $region36: #{tpu_custom_call.1} parent=11 // pred_fallthru
          _
      $region12: #{tpu_custom_call.1} parent=5 // pred_fallthru
        _
      %p259 = scmp.lt.s32.totalorder %s18, 2
      // Predicated region
      $region37: #{tpu_custom_call.1} parent=5 // pred_check
        %p260 = pneg %p259
      $region38: #{tpu_custom_call.1} parent=5 // pred_check_branch
        %262 = sbr.rel (%p260) target = $region40
      $region39: #{tpu_custom_call.1} parent=5 // pred_region
        // Predicated region
        $region41: #{tpu_custom_call.1} parent=39 // pred_check
          %p263 = pneg %p38
        $region42: #{tpu_custom_call.1} parent=39 // pred_check_branch
          %265 = sbr.rel (%p263) target = $region44
        $region43: #{tpu_custom_call.1} parent=39 // pred_region
          %p266 = scmp.lt.s32.totalorder %s18, 1
          %s267 = scalar_select %p266, %s18, 1
          %s268 = smul.addr %s267, 8
          %s269 = smul.addr %s268, 8
          %s270 = scalar_lea.vmem %s0, %s269
        $region44: #{tpu_custom_call.1} parent=39 // pred_fallthru
          _
      $region40: #{tpu_custom_call.1} parent=5 // pred_fallthru
        _
      %p271 = scmp.le.s32.totalorder 1, %s18
      %p272 = scmp.lt.s32.totalorder %s18, 3
      %p273 = pnand %p271, %p272
      %p274 = pneg %p273
      // Predicated region
      $region45: #{tpu_custom_call.1} parent=5 // pred_check
        _
      $region46: #{tpu_custom_call.1} parent=5 // pred_check_branch
        %276 = sbr.rel (%p273) target = $region48
      $region47: #{tpu_custom_call.1} parent=5 // pred_region
        %s277 = ssub.s32 %s18, 1
        // Predicated region
        $region49: #{tpu_custom_call.1} parent=47 // pred_check
          %p278 = pneg %p65
        $region50: #{tpu_custom_call.1} parent=47 // pred_check_branch
          %280 = sbr.rel (%p278) target = $region52
        $region51: #{tpu_custom_call.1} parent=47 // pred_region
          %281 = dma.done [#allocation3], 256
        $region52: #{tpu_custom_call.1} parent=47 // pred_fallthru
          _
        // Predicated region
        $region53: #{tpu_custom_call.1} parent=47 // pred_check
          %p282 = pneg %p128
        $region54: #{tpu_custom_call.1} parent=47 // pred_check_branch
          %284 = sbr.rel (%p282) target = $region56
        $region55: #{tpu_custom_call.1} parent=47 // pred_region
          %285 = dma.done [#allocation6], 256
        $region56: #{tpu_custom_call.1} parent=47 // pred_fallthru
          _
        // Predicated region
        $region57: #{tpu_custom_call.1} parent=47 // pred_check
          %p286 = pneg %p170
        $region58: #{tpu_custom_call.1} parent=47 // pred_check_branch
          %288 = sbr.rel (%p286) target = $region60
        $region59: #{tpu_custom_call.1} parent=47 // pred_region
          %289 = dma.done [#allocation6], 2048
        $region60: #{tpu_custom_call.1} parent=47 // pred_fallthru
          _
        %p290 = scmp.lt.s32.totalorder %s23, 1
        %s291 = scalar_select %p290, %s23, 1
        %s292 = smul.addr %s291, 8
        %s293 = smul.addr %s292, 8
        %s294 = scalar_lea.vmem %s0, %s293
        %p295 = pneg %p44
        %p296 = pneg %p41
        %p297 = pneg %p65
        %p298 = pneg %p62
        %p299 = pneg %p86
        %p300 = pneg %p83
        %p301 = pneg %p107
        %p302 = pneg %p104
        %p303 = pneg %p128
        %p304 = pneg %p125
        %p305 = pneg %p149
        %p306 = pneg %p146
        %p307 = pneg %p170
        %p308 = pneg %p167
        %p309 = pneg %p196
        %p310 = pneg %p193
        %s311 = sand.u32 %s183, 1
        %s312 = scalar_lea.sflag [#allocation4], %s311
        %s313 = sand.u32 %s183, 1
        %s314 = smul.addr %s313, 64
        %s315 = scalar_lea.vmem [#allocation8], %s314
        %p316 = scmp.lt.s32.totalorder %s23, 1
        %s317 = scalar_select %p316, %s23, 1
        %s318 = smul.addr %s317, 8
        %s319 = smul.addr %s318, 8
        %s320 = scalar_lea.vmem %s0, %s319
        %v322 = vld [vmem:[%s320] sm:$0xff]
        %v323 = vld [vmem:[%s320 + $0x8] sm:$0xff]
        %v324 = vld [vmem:[%s320 + $0x10] sm:$0xff]
        %v325 = vld [vmem:[%s320 + $0x18] sm:$0xff]
        %v326 = vld [vmem:[%s320 + $0x20] sm:$0xff]
        %v327 = vld [vmem:[%s320 + $0x28] sm:$0xff]
        %v328 = vld [vmem:[%s320 + $0x30] sm:$0xff]
        %v329 = vld [vmem:[%s320 + $0x38] sm:$0xff]
        %v330 = vpack.c.bf16 %v324, %v322
        %v331 = vpack.c.bf16 %v325, %v323
        %v332 = vpack.c.bf16 %v328, %v326
        %v333 = vpack.c.bf16 %v329, %v327
        %v334 = vld [vmem:[#allocation7] sm:$0xff]
        %v335 = vld [vmem:[#allocation7 + $0x8] sm:$0xff]
        %v336 = vld [vmem:[#allocation7 + $0x10] sm:$0xff]
        %v337 = vld [vmem:[#allocation7 + $0x18] sm:$0xff]
        %s338 = scalar_lea.vmem [#allocation7], 32
        %v339 = vld [vmem:[%s338] sm:$0xff]
        %v340 = vld [vmem:[%s338 + $0x8] sm:$0xff]
        %v341 = vld [vmem:[%s338 + $0x10] sm:$0xff]
        %v342 = vld [vmem:[%s338 + $0x18] sm:$0xff]
        %s343 = scalar_lea.vmem [#allocation7], 64
        %v344 = vld [vmem:[%s343] sm:$0xff]
        %v345 = vld [vmem:[%s343 + $0x8] sm:$0xff]
        %v346 = vld [vmem:[%s343 + $0x10] sm:$0xff]
        %v347 = vld [vmem:[%s343 + $0x18] sm:$0xff]
        %s348 = scalar_lea.vmem [#allocation7], 96
        %v349 = vld [vmem:[%s348] sm:$0xff]
        %v350 = vld [vmem:[%s348 + $0x8] sm:$0xff]
        %v351 = vld [vmem:[%s348 + $0x10] sm:$0xff]
        %v352 = vld [vmem:[%s348 + $0x18] sm:$0xff]
        %v353 = vld [vmem:[%s2] sm:$0xf]
        %v354 = vld [vmem:[%s2 + $0x4] sm:$0xf]
        %v355 = vld [vmem:[%s2 + $0x8] sm:$0xf]
        %v356 = vld [vmem:[%s2 + $0xc] sm:$0xf]
        %v357 = vld [vmem:[%s2 + $0x10] sm:$0xf]
        %v358 = vld [vmem:[%s2 + $0x14] sm:$0xf]
        %v359 = vld [vmem:[%s2 + $0x18] sm:$0xf]
        %v360 = vld [vmem:[%s2 + $0x1c] sm:$0xf]
        %v361 = vld [vmem:[%s2 + $0x20] sm:$0xf]
        %v362 = vld [vmem:[%s2 + $0x24] sm:$0xf]
        %v363 = vld [vmem:[%s2 + $0x28] sm:$0xf]
        %v364 = vld [vmem:[%s2 + $0x2c] sm:$0xf]
        %v365 = vld [vmem:[%s2 + $0x30] sm:$0xf]
        %v366 = vld [vmem:[%s2 + $0x34] sm:$0xf]
        %v367 = vld [vmem:[%s2 + $0x38] sm:$0xf]
        %v368 = vld [vmem:[%s2 + $0x3c] sm:$0xf]
        %v369 = vld [vmem:[%s2 + $0x40] sm:$0xf]
        %v370 = vld [vmem:[%s2 + $0x44] sm:$0xf]
        %v371 = vld [vmem:[%s2 + $0x48] sm:$0xf]
        %v372 = vld [vmem:[%s2 + $0x4c] sm:$0xf]
        %v373 = vld [vmem:[%s2 + $0x50] sm:$0xf]
        %v374 = vld [vmem:[%s2 + $0x54] sm:$0xf]
        %v375 = vld [vmem:[%s2 + $0x58] sm:$0xf]
        %v376 = vld [vmem:[%s2 + $0x5c] sm:$0xf]
        %v377 = vld [vmem:[%s2 + $0x60] sm:$0xf]
        %v378 = vld [vmem:[%s2 + $0x64] sm:$0xf]
        %v379 = vld [vmem:[%s2 + $0x68] sm:$0xf]
        %v380 = vld [vmem:[%s2 + $0x6c] sm:$0xf]
        %v381 = vld [vmem:[%s2 + $0x70] sm:$0xf]
        %v382 = vld [vmem:[%s2 + $0x74] sm:$0xf]
        %v383 = vld [vmem:[%s2 + $0x78] sm:$0xf]
        %v384 = vld [vmem:[%s2 + $0x7c] sm:$0xf]
        %v417 = vunpack.c.l.b16 %v353
        %v418 = vunpack.c.l.b16 %v354
        %v419 = vunpack.c.l.b16 %v355
        %v420 = vunpack.c.l.b16 %v356
        %v421 = vunpack.c.l.b16 %v357
        %v422 = vunpack.c.l.b16 %v358
        %v423 = vunpack.c.l.b16 %v359
        %v424 = vunpack.c.l.b16 %v360
        %v425 = vunpack.c.l.b16 %v361
        %v426 = vunpack.c.l.b16 %v362
        %v427 = vunpack.c.l.b16 %v363
        %v428 = vunpack.c.l.b16 %v364
        %v429 = vunpack.c.l.b16 %v365
        %v430 = vunpack.c.l.b16 %v366
        %v431 = vunpack.c.l.b16 %v367
        %v432 = vunpack.c.l.b16 %v368
        %v433 = vunpack.c.l.b16 %v369
        %v434 = vunpack.c.l.b16 %v370
        %v435 = vunpack.c.l.b16 %v371
        %v436 = vunpack.c.l.b16 %v372
        %v437 = vunpack.c.l.b16 %v373
        %v438 = vunpack.c.l.b16 %v374
        %v439 = vunpack.c.l.b16 %v375
        %v440 = vunpack.c.l.b16 %v376
        %v441 = vunpack.c.l.b16 %v377
        %v442 = vunpack.c.l.b16 %v378
        %v443 = vunpack.c.l.b16 %v379
        %v444 = vunpack.c.l.b16 %v380
        %v445 = vunpack.c.l.b16 %v381
        %v446 = vunpack.c.l.b16 %v382
        %v447 = vunpack.c.l.b16 %v383
        %v448 = vunpack.c.l.b16 %v384
        %v449 = vpack.c.b16 %v418, %v417
        %v450 = vpack.c.b16 %v420, %v419
        %v451 = vpack.c.b16 %v422, %v421
        %v452 = vpack.c.b16 %v424, %v423
        %v453 = vpack.c.b16 %v426, %v425
        %v454 = vpack.c.b16 %v428, %v427
        %v455 = vpack.c.b16 %v430, %v429
        %v456 = vpack.c.b16 %v432, %v431
        %v457 = vpack.c.b16 %v434, %v433
        %v458 = vpack.c.b16 %v436, %v435
        %v459 = vpack.c.b16 %v438, %v437
        %v460 = vpack.c.b16 %v440, %v439
        %v461 = vpack.c.b16 %v442, %v441
        %v462 = vpack.c.b16 %v444, %v443
        %v463 = vpack.c.b16 %v446, %v445
        %v464 = vpack.c.b16 %v448, %v447
        %481 = vmatprep.subr.bf16.mxu0 0
        %482 = vmatpush1.bf16.msra.mxu0 %v449
        %483 = vmatprep.subr.bf16.mxu0 0
        %484 = vmatpush1.bf16.msra.mxu0 %v450
        %485 = vmatprep.subr.bf16.mxu0 0
        %486 = vmatpush1.bf16.msra.mxu0 %v451
        %487 = vmatprep.subr.bf16.mxu0 0
        %488 = vmatpush1.bf16.msra.mxu0 %v452
        %489 = vmatprep.subr.bf16.mxu0 0
        %490 = vmatpush1.bf16.msra.mxu0 %v453
        %491 = vmatprep.subr.bf16.mxu0 0
        %492 = vmatpush1.bf16.msra.mxu0 %v454
        %493 = vmatprep.subr.bf16.mxu0 0
        %494 = vmatpush1.bf16.msra.mxu0 %v455
        %495 = vmatprep.subr.bf16.mxu0 0
        %496 = vmatpush1.bf16.msra.mxu0 %v456
        %497 = vmatprep.subr.bf16.mxu0 0
        %498 = vmatpush1.bf16.msra.mxu0 %v457
        %499 = vmatprep.subr.bf16.mxu0 0
        %500 = vmatpush1.bf16.msra.mxu0 %v458
        %501 = vmatprep.subr.bf16.mxu0 0
        %502 = vmatpush1.bf16.msra.mxu0 %v459
        %503 = vmatprep.subr.bf16.mxu0 0
        %504 = vmatpush1.bf16.msra.mxu0 %v460
        %505 = vmatprep.subr.bf16.mxu0 0
        %506 = vmatpush1.bf16.msra.mxu0 %v461
        %507 = vmatprep.subr.bf16.mxu0 0
        %508 = vmatpush1.bf16.msra.mxu0 %v462
        %509 = vmatprep.subr.bf16.mxu0 0
        %510 = vmatpush1.bf16.msra.mxu0 %v463
        %511 = vmatprep.subr.bf16.mxu0 0
        %512 = vmatpush1.bf16.msra.mxu0 %v464
        %513 = vmatprep.mubr.bf16.mxu0 %v331
        %514 = vmatmul.mubr.bf16.gmra.mrb[0].mxu0 %v330
        %v515 = vpop.f32.mrb[0].mxu0
        %v516 = vadd.f32 0.0, %v515
        %v517 = vpop.f32.mrb[0].mxu0
        %v518 = vpop.f32.mrb[0].mxu0
        %v519 = vadd.f32 0.0, %v518
        %v520 = vpop.f32.mrb[0].mxu0
        %521 = vmatprep.mubr.bf16.mxu0 %v333
        %522 = vmatmul.mubr.bf16.gmra.mrb[0].mxu0 %v332
        %v523 = vpop.f32.mrb[0].mxu0
        %v524 = vadd.f32 0.0, %v523
        %v525 = vpop.f32.mrb[0].mxu0
        %v526 = vpop.f32.mrb[0].mxu0
        %v527 = vadd.f32 0.0, %v526
        %v528 = vpop.f32.mrb[0].mxu0
        %529 = vdwg.mxu0
        %v530 = vpack.c.bf16 %v519, %v516
        %v531 = vpack.c.bf16 %v527, %v524
        %v532 = vld [vmem:[#allocation5] sm:$0xf]
        %v533 = vld [vmem:[#allocation5 + $0x4] sm:$0xf]
        %v534 = vld [vmem:[#allocation5 + $0x8] sm:$0xf]
        %v535 = vld [vmem:[#allocation5 + $0xc] sm:$0xf]
        %v540 = vunpack.c.l.b16 %v532
        %v541 = vunpack.c.l.b16 %v533
        %v542 = vunpack.c.l.b16 %v534
        %v543 = vunpack.c.l.b16 %v535
        %v544 = vpack.c.b16 %v541, %v540
        %v545 = vpack.c.b16 %v543, %v542
        %vm546 = vcmask 261120
        %v548 = vsel %vm546, %v544, 0
        %v551 = vsel %vm546, %v545, 0
        %553 = vmatprep.subr.bf16.mxu0 0
        %554 = vmatpush1.bf16.msra.mxu0 %v530
        %555 = vmatprep.subr.bf16.mxu0 0
        %556 = vmatpush1.bf16.msra.mxu0 %v531
        %557 = vmatprep.subr.bf16.mxu0 0
        %558 = vmatpush1.bf16.msra.mxu0 0
        %559 = vmatprep.subr.bf16.mxu0 0
        %560 = vmatpush1.bf16.msra.mxu0 0
        %561 = vmatprep.subr.bf16.mxu0 0
        %562 = vmatpush1.bf16.msra.mxu0 0
        %563 = vmatprep.subr.bf16.mxu0 0
        %564 = vmatpush1.bf16.msra.mxu0 0
        %565 = vmatprep.subr.bf16.mxu0 0
        %566 = vmatpush1.bf16.msra.mxu0 0
        %567 = vmatprep.subr.bf16.mxu0 0
        %568 = vmatpush1.bf16.msra.mxu0 0
        %569 = vmatprep.subr.bf16.mxu0 0
        %570 = vmatpush1.bf16.msra.mxu0 0
        %571 = vmatprep.subr.bf16.mxu0 0
        %572 = vmatpush1.bf16.msra.mxu0 0
        %573 = vmatprep.subr.bf16.mxu0 0
        %574 = vmatpush1.bf16.msra.mxu0 0
        %575 = vmatprep.subr.bf16.mxu0 0
        %576 = vmatpush1.bf16.msra.mxu0 0
        %577 = vmatprep.subr.bf16.mxu0 0
        %578 = vmatpush1.bf16.msra.mxu0 0
        %579 = vmatprep.subr.bf16.mxu0 0
        %580 = vmatpush1.bf16.msra.mxu0 0
        %581 = vmatprep.subr.bf16.mxu0 0
        %582 = vmatpush1.bf16.msra.mxu0 0
        %583 = vmatprep.subr.bf16.mxu0 0
        %584 = vmatpush1.bf16.msra.mxu0 0
        %585 = vmatprep.mubr.bf16.mxu0 0
        %586 = vmatmul.mubr.bf16.gmra.mrb[0].mxu0 %v548
        %v587 = vpop.f32.mrb[0].mxu0
        %v588 = vadd.f32 0.0, %v587
        %v589 = vpop.f32.mrb[0].mxu0
        %v590 = vpop.f32.mrb[0].mxu0
        %v591 = vadd.f32 0.0, %v590
        %v592 = vpop.f32.mrb[0].mxu0
        %593 = vmatprep.mubr.bf16.mxu0 0
        %594 = vmatmul.mubr.bf16.gmra.mrb[0].mxu0 %v551
        %v595 = vpop.f32.mrb[0].mxu0
        %v596 = vadd.f32 0.0, %v595
        %v597 = vpop.f32.mrb[0].mxu0
        %v598 = vpop.f32.mrb[0].mxu0
        %v599 = vadd.f32 0.0, %v598
        %v600 = vpop.f32.mrb[0].mxu0
        %601 = vdwg.mxu0
        %v602 = vmul.f32 %v588, %v334
        %v603 = vmul.f32 %v591, %v335
        %v604 = vmul.f32 %v596, %v336
        %v605 = vmul.f32 %v599, %v337
        %vm606 = vcmask 523264
        %v607 = vsel %vm606, %v602, 0.0
        %608 = vadd.xlane.f32.xlu0 %v607
        %v609 = vpop.xlane.xlu0 %608
        %v610 = vsel %vm606, %v603, 0.0
        %611 = vadd.xlane.f32.xlu0 %v610
        %v612 = vpop.xlane.xlu0 %611
        %v613 = vsel %vm606, %v604, 0.0
        %614 = vadd.xlane.f32.xlu0 %v613
        %v615 = vpop.xlane.xlu0 %614
        %v616 = vsel %vm606, %v605, 0.0
        %617 = vadd.xlane.f32.xlu0 %v616
        %v618 = vpop.xlane.xlu0 %617
        %v619 = vsub.f32 %v588, %v609
        %v620 = vsub.f32 %v591, %v612
        %v621 = vsub.f32 %v596, %v615
        %v622 = vsub.f32 %v599, %v618
        %v623 = vmul.f32 %v619, %v619
        %v624 = vmul.f32 %v620, %v620
        %v625 = vmul.f32 %v621, %v621
        %v626 = vmul.f32 %v622, %v622
        %v627 = vmul.f32 %v623, %v334
        %v628 = vmul.f32 %v624, %v335
        %v629 = vmul.f32 %v625, %v336
        %v630 = vmul.f32 %v626, %v337
        %v631 = vsel %vm606, %v627, 0.0
        %632 = vadd.xlane.f32.xlu0 %v631
        %v633 = vpop.xlane.xlu0 %632
        %v634 = vsel %vm606, %v628, 0.0
        %635 = vadd.xlane.f32.xlu0 %v634
        %v636 = vpop.xlane.xlu0 %635
        %v637 = vsel %vm606, %v629, 0.0
        %638 = vadd.xlane.f32.xlu0 %v637
        %v639 = vpop.xlane.xlu0 %638
        %v640 = vsel %vm606, %v630, 0.0
        %641 = vadd.xlane.f32.xlu0 %v640
        %v642 = vpop.xlane.xlu0 %641
        %v643 = vadd.f32 %v633, 1e-05
        %v644 = vadd.f32 %v636, 1e-05
        %v645 = vadd.f32 %v639, 1e-05
        %v646 = vadd.f32 %v642, 1e-05
        %v647 = vrsqrt.pop %v643
        %v648 = vrsqrt.pop %v644
        %v649 = vrsqrt.pop %v645
        %v650 = vrsqrt.pop %v646
        %v651 = vmul.f32 %v619, %v647
        %v652 = vmul.f32 %v620, %v648
        %v653 = vmul.f32 %v621, %v649
        %v654 = vmul.f32 %v622, %v650
        %v655 = vmul.f32 %v651, %v344
        %v656 = vmul.f32 %v652, %v345
        %v657 = vmul.f32 %v653, %v346
        %v658 = vmul.f32 %v654, %v347
        %v659 = vadd.f32 %v655, %v349
        %v660 = vadd.f32 %v656, %v350
        %v661 = vadd.f32 %v657, %v351
        %v662 = vadd.f32 %v658, %v352
        %v663 = vmax.f32 %v659, 0.0
        %v664 = vmax.f32 %v660, 0.0
        %v665 = vmax.f32 %v661, 0.0
        %v666 = vmax.f32 %v662, 0.0
        %v667 = vmul.f32 %v663, %v339
        %v668 = vmul.f32 %v664, %v340
        %v669 = vmul.f32 %v665, %v341
        %v670 = vmul.f32 %v666, %v342
        %v671 = vpack.c.bf16 %v668, %v667
        %v672 = vpack.c.bf16 %v670, %v669
        %v673 = vld [vmem:[#allocation2] sm:$0xf]
        %v674 = vld [vmem:[#allocation2 + $0x4] sm:$0xf]
        %v675 = vld [vmem:[#allocation2 + $0x8] sm:$0xf]
        %v676 = vld [vmem:[#allocation2 + $0xc] sm:$0xf]
        %v677 = vld [vmem:[%s5] sm:$0xf]
        %v678 = vld [vmem:[%s5 + $0x4] sm:$0xf]
        %v679 = vld [vmem:[%s5 + $0x8] sm:$0xf]
        %v680 = vld [vmem:[%s5 + $0xc] sm:$0xf]
        %v685 = vunpack.c.l.b16 %v677
        %v686 = vunpack.c.l.b16 %v678
        %v687 = vunpack.c.l.b16 %v679
        %v688 = vunpack.c.l.b16 %v680
        %v689 = vpack.c.b16 %v686, %v685
        %v690 = vpack.c.b16 %v688, %v687
        %v692 = vsel %vm546, %v689, 0
        %v695 = vsel %vm546, %v690, 0
        %697 = vmatprep.subr.bf16.mxu0 0
        %698 = vmatpush1.bf16.msra.mxu0 %v671
        %699 = vmatprep.subr.bf16.mxu0 0
        %700 = vmatpush1.bf16.msra.mxu0 %v672
        %701 = vmatprep.subr.bf16.mxu0 0
        %702 = vmatpush1.bf16.msra.mxu0 0
        %703 = vmatprep.subr.bf16.mxu0 0
        %704 = vmatpush1.bf16.msra.mxu0 0
        %705 = vmatprep.subr.bf16.mxu0 0
        %706 = vmatpush1.bf16.msra.mxu0 0
        %707 = vmatprep.subr.bf16.mxu0 0
        %708 = vmatpush1.bf16.msra.mxu0 0
        %709 = vmatprep.subr.bf16.mxu0 0
        %710 = vmatpush1.bf16.msra.mxu0 0
        %711 = vmatprep.subr.bf16.mxu0 0
        %712 = vmatpush1.bf16.msra.mxu0 0
        %713 = vmatprep.subr.bf16.mxu0 0
        %714 = vmatpush1.bf16.msra.mxu0 0
        %715 = vmatprep.subr.bf16.mxu0 0
        %716 = vmatpush1.bf16.msra.mxu0 0
        %717 = vmatprep.subr.bf16.mxu0 0
        %718 = vmatpush1.bf16.msra.mxu0 0
        %719 = vmatprep.subr.bf16.mxu0 0
        %720 = vmatpush1.bf16.msra.mxu0 0
        %721 = vmatprep.subr.bf16.mxu0 0
        %722 = vmatpush1.bf16.msra.mxu0 0
        %723 = vmatprep.subr.bf16.mxu0 0
        %724 = vmatpush1.bf16.msra.mxu0 0
        %725 = vmatprep.subr.bf16.mxu0 0
        %726 = vmatpush1.bf16.msra.mxu0 0
        %727 = vmatprep.subr.bf16.mxu0 0
        %728 = vmatpush1.bf16.msra.mxu0 0
        %729 = vmatprep.mubr.bf16.mxu0 0
        %730 = vmatmul.mubr.bf16.gmra.mrb[0].mxu0 %v692
        %v731 = vpop.f32.mrb[0].mxu0
        %v732 = vadd.f32 0.0, %v731
        %v733 = vpop.f32.mrb[0].mxu0
        %v734 = vpop.f32.mrb[0].mxu0
        %v735 = vadd.f32 0.0, %v734
        %v736 = vpop.f32.mrb[0].mxu0
        %737 = vmatprep.mubr.bf16.mxu0 0
        %738 = vmatmul.mubr.bf16.gmra.mrb[0].mxu0 %v695
        %v739 = vpop.f32.mrb[0].mxu0
        %v740 = vadd.f32 0.0, %v739
        %v741 = vpop.f32.mrb[0].mxu0
        %v742 = vpop.f32.mrb[0].mxu0
        %v743 = vadd.f32 0.0, %v742
        %v744 = vpop.f32.mrb[0].mxu0
        %745 = vdwg.mxu0
        %v746 = vpack.c.bf16 %v735, %v732
        %v747 = vpack.c.bf16 %v743, %v740
        %v748 = vld [vmem:[%s3] sm:$0xff]
        %v749 = vld [vmem:[%s3 + $0x8] sm:$0xff]
        %v750 = vld [vmem:[%s3 + $0x10] sm:$0xff]
        %v751 = vld [vmem:[%s3 + $0x18] sm:$0xff]
        %v752 = vld [vmem:[%s3 + $0x20] sm:$0xff]
        %v753 = vld [vmem:[%s3 + $0x28] sm:$0xff]
        %v754 = vld [vmem:[%s3 + $0x30] sm:$0xff]
        %v755 = vld [vmem:[%s3 + $0x38] sm:$0xff]
        %v764 = vunpack.c.l.b16 %v748
        %v765 = vunpack.c.h.b16 %v748
        %v766 = vunpack.c.l.b16 %v749
        %v767 = vunpack.c.h.b16 %v749
        %v768 = vunpack.c.l.b16 %v750
        %v769 = vunpack.c.h.b16 %v750
        %v770 = vunpack.c.l.b16 %v751
        %v771 = vunpack.c.h.b16 %v751
        %v772 = vunpack.c.l.b16 %v752
        %v773 = vunpack.c.h.b16 %v752
        %v774 = vunpack.c.l.b16 %v753
        %v775 = vunpack.c.h.b16 %v753
        %v776 = vunpack.c.l.b16 %v754
        %v777 = vunpack.c.h.b16 %v754
        %v778 = vunpack.c.l.b16 %v755
        %v779 = vunpack.c.h.b16 %v755
        %v780 = vpack.c.b16 %v766, %v764
        %v781 = vpack.c.b16 %v767, %v765
        %v782 = vpack.c.b16 %v770, %v768
        %v783 = vpack.c.b16 %v771, %v769
        %v784 = vpack.c.b16 %v774, %v772
        %v785 = vpack.c.b16 %v775, %v773
        %v786 = vpack.c.b16 %v778, %v776
        %v787 = vpack.c.b16 %v779, %v777
        %v797 = vsel %vm606, %v746, 0
        %v800 = vsel %vm606, %v747, 0
        %802 = vmatprep.subr.bf16.mxu0 %v781
        %803 = vmatpush1.bf16.msra.mxu0 %v780
        %804 = vmatprep.subr.bf16.mxu0 %v783
        %805 = vmatpush1.bf16.msra.mxu0 %v782
        %806 = vmatprep.subr.bf16.mxu0 %v785
        %807 = vmatpush1.bf16.msra.mxu0 %v784
        %808 = vmatprep.subr.bf16.mxu0 %v787
        %809 = vmatpush1.bf16.msra.mxu0 %v786
        %810 = vmatprep.subr.bf16.mxu0 0
        %811 = vmatpush1.bf16.msra.mxu0 0
        %812 = vmatprep.subr.bf16.mxu0 0
        %813 = vmatpush1.bf16.msra.mxu0 0
        %814 = vmatprep.subr.bf16.mxu0 0
        %815 = vmatpush1.bf16.msra.mxu0 0
        %816 = vmatprep.subr.bf16.mxu0 0
        %817 = vmatpush1.bf16.msra.mxu0 0
        %818 = vmatprep.subr.bf16.mxu0 0
        %819 = vmatpush1.bf16.msra.mxu0 0
        %820 = vmatprep.subr.bf16.mxu0 0
        %821 = vmatpush1.bf16.msra.mxu0 0
        %822 = vmatprep.subr.bf16.mxu0 0
        %823 = vmatpush1.bf16.msra.mxu0 0
        %824 = vmatprep.subr.bf16.mxu0 0
        %825 = vmatpush1.bf16.msra.mxu0 0
        %826 = vmatprep.subr.bf16.mxu0 0
        %827 = vmatpush1.bf16.msra.mxu0 0
        %828 = vmatprep.subr.bf16.mxu0 0
        %829 = vmatpush1.bf16.msra.mxu0 0
        %830 = vmatprep.subr.bf16.mxu0 0
        %831 = vmatpush1.bf16.msra.mxu0 0
        %832 = vmatprep.subr.bf16.mxu0 0
        %833 = vmatpush1.bf16.msra.mxu0 0
        %834 = vmatprep.mubr.bf16.mxu0 0
        %835 = vmatmul.mubr.bf16.gmra.mrb[0].mxu0 %v797
        %v836 = vpop.f32.mrb[0].mxu0
        %v837 = vadd.f32 0.0, %v836
        %v838 = vpop.f32.mrb[0].mxu0
        %v839 = vadd.f32 0.0, %v838
        %v840 = vpop.f32.mrb[0].mxu0
        %v841 = vadd.f32 0.0, %v840
        %v842 = vpop.f32.mrb[0].mxu0
        %v843 = vadd.f32 0.0, %v842
        %844 = vmatprep.mubr.bf16.mxu0 0
        %845 = vmatmul.mubr.bf16.gmra.mrb[0].mxu0 %v800
        %v846 = vpop.f32.mrb[0].mxu0
        %v847 = vadd.f32 0.0, %v846
        %v848 = vpop.f32.mrb[0].mxu0
        %v849 = vadd.f32 0.0, %v848
        %v850 = vpop.f32.mrb[0].mxu0
        %v851 = vadd.f32 0.0, %v850
        %v852 = vpop.f32.mrb[0].mxu0
        %v853 = vadd.f32 0.0, %v852
        %854 = vdwg.mxu0
        %v859 = vunpack.c.l.b16 %v673
        %v860 = vunpack.c.l.b16 %v674
        %v861 = vunpack.c.l.b16 %v675
        %v862 = vunpack.c.l.b16 %v676
        %v863 = vpack.c.b16 %v860, %v859
        %v864 = vpack.c.b16 %v862, %v861
        %v866 = vsel %vm546, %v863, 0
        %v869 = vsel %vm546, %v864, 0
        %871 = vmatprep.subr.bf16.mxu0 %v331
        %872 = vmatpush1.bf16.msra.mxu0 %v330
        %873 = vmatprep.subr.bf16.mxu0 %v333
        %874 = vmatpush1.bf16.msra.mxu0 %v332
        %875 = vmatprep.subr.bf16.mxu0 0
        %876 = vmatpush1.bf16.msra.mxu0 0
        %877 = vmatprep.subr.bf16.mxu0 0
        %878 = vmatpush1.bf16.msra.mxu0 0
        %879 = vmatprep.subr.bf16.mxu0 0
        %880 = vmatpush1.bf16.msra.mxu0 0
        %881 = vmatprep.subr.bf16.mxu0 0
        %882 = vmatpush1.bf16.msra.mxu0 0
        %883 = vmatprep.subr.bf16.mxu0 0
        %884 = vmatpush1.bf16.msra.mxu0 0
        %885 = vmatprep.subr.bf16.mxu0 0
        %886 = vmatpush1.bf16.msra.mxu0 0
        %887 = vmatprep.subr.bf16.mxu0 0
        %888 = vmatpush1.bf16.msra.mxu0 0
        %889 = vmatprep.subr.bf16.mxu0 0
        %890 = vmatpush1.bf16.msra.mxu0 0
        %891 = vmatprep.subr.bf16.mxu0 0
        %892 = vmatpush1.bf16.msra.mxu0 0
        %893 = vmatprep.subr.bf16.mxu0 0
        %894 = vmatpush1.bf16.msra.mxu0 0
        %895 = vmatprep.subr.bf16.mxu0 0
        %896 = vmatpush1.bf16.msra.mxu0 0
        %897 = vmatprep.subr.bf16.mxu0 0
        %898 = vmatpush1.bf16.msra.mxu0 0
        %899 = vmatprep.subr.bf16.mxu0 0
        %900 = vmatpush1.bf16.msra.mxu0 0
        %901 = vmatprep.subr.bf16.mxu0 0
        %902 = vmatpush1.bf16.msra.mxu0 0
        %903 = vmatprep.mubr.bf16.mxu0 0
        %904 = vmatmul.mubr.bf16.gmra.mrb[0].mxu0 %v866
        %v905 = vpop.f32.mrb[0].mxu0
        %v906 = vadd.f32 %v837, %v905
        %v907 = vpop.f32.mrb[0].mxu0
        %v908 = vadd.f32 %v839, %v907
        %v909 = vpop.f32.mrb[0].mxu0
        %v910 = vadd.f32 %v841, %v909
        %v911 = vpop.f32.mrb[0].mxu0
        %v912 = vadd.f32 %v843, %v911
        %913 = vmatprep.mubr.bf16.mxu0 0
        %914 = vmatmul.mubr.bf16.gmra.mrb[0].mxu0 %v869
        %v915 = vpop.f32.mrb[0].mxu0
        %v916 = vadd.f32 %v847, %v915
        %v917 = vpop.f32.mrb[0].mxu0
        %v918 = vadd.f32 %v849, %v917
        %v919 = vpop.f32.mrb[0].mxu0
        %v920 = vadd.f32 %v851, %v919
        %v921 = vpop.f32.mrb[0].mxu0
        %v922 = vadd.f32 %v853, %v921
        %923 = vdwg.mxu0
        %924 = vst [vmem:[%s315] sm:$0xff] %v906
        %925 = vst [vmem:[%s315 + $0x8] sm:$0xff] %v908
        %926 = vst [vmem:[%s315 + $0x10] sm:$0xff] %v910
        %927 = vst [vmem:[%s315 + $0x18] sm:$0xff] %v912
        %928 = vst [vmem:[%s315 + $0x20] sm:$0xff] %v916
        %929 = vst [vmem:[%s315 + $0x28] sm:$0xff] %v918
        %930 = vst [vmem:[%s315 + $0x30] sm:$0xff] %v920
        %931 = vst [vmem:[%s315 + $0x38] sm:$0xff] %v922
        %s932 = sand.u32 %s183, 1
        %s933 = scalar_lea.sflag [#allocation4], %s932
        %s934 = sand.u32 %s183, 1
        %s935 = smul.addr %s934, 64
        %s936 = scalar_lea.vmem [#allocation8], %s935
        // Predicated region
        $region61: #{tpu_custom_call.1} parent=47 // pred_check
          %p937 = pneg %p193
        $region62: #{tpu_custom_call.1} parent=47 // pred_check_branch
          %939 = sbr.rel (%p937) target = $region64
        $region63: #{tpu_custom_call.1} parent=47 // pred_region
          %s941 = ssub.s32 1024, 1024
          %942 = vsyncadd %s933, %s941
          %s943 = smul.addr %s23, 8
          %s944 = smul.addr %s943, 128
          %s945 = scalar_lea.hbm %s7, %s944
          %s946 = sshll.u32 %s936, 4
          %s947 = int_to_ptr.vmem [resolvable:$true] %s946
          %952 = dma.vmem_to_hbm [thread:$0]  %s947, 1024, %s945, %s933, 256, 256, 16
        $region64: #{tpu_custom_call.1} parent=47 // pred_fallthru
          _
      $region48: #{tpu_custom_call.1} parent=5 // pred_fallthru
        _
      %p953 = scmp.le.s32.totalorder 2, %s18
      // Predicated region
      $region65: #{tpu_custom_call.1} parent=5 // pred_check
        %p954 = pneg %p953
      $region66: #{tpu_custom_call.1} parent=5 // pred_check_branch
        %956 = sbr.rel (%p954) target = $region68
      $region67: #{tpu_custom_call.1} parent=5 // pred_region
        %s957 = ssub.s32 %s18, 2
        // Predicated region
        $region69: #{tpu_custom_call.1} parent=67 // pred_check
          %p958 = pneg %p199
        $region70: #{tpu_custom_call.1} parent=67 // pred_check_branch
          %960 = sbr.rel (%p958) target = $region72
        $region71: #{tpu_custom_call.1} parent=67 // pred_region
          %s961 = sand.u32 %s184, 1
          %s962 = scalar_lea.sflag [#allocation4], %s961
          %s963 = sand.u32 %s184, 1
          %s964 = smul.addr %s963, 64
          %s965 = scalar_lea.vmem [#allocation8], %s964
          %966 = dma.done %s962, 1024
        $region72: #{tpu_custom_call.1} parent=67 // pred_fallthru
          _
      $region68: #{tpu_custom_call.1} parent=5 // pred_fallthru
        _
    $region6: #{tpu_custom_call.1} parent=1 // loop_footer
      %s22 = sadd.s32 1, %s18
    $region7: #{tpu_custom_call.1} parent=1 // loop_footer_branch
      %17 = sbr.rel target = $region3
    $region8: #{tpu_custom_call.1} parent=1 // loop_exit
      _
    %967 = vsyncpa [#allocation3], 1
    %s968 = scalar_lea.sflag [#allocation3], 1
    %969 = vsyncpa %s968, 1
    %970 = vsyncpa [#allocation6], 1
    %971 = vsyncpa [#allocation4], 1
    %s972 = scalar_lea.sflag [#allocation4], 1
    %973 = vsyncpa %s972, 1

</llo_original>
